<compile_context>
chip_gen: v7x
topology: tpu7x:2x2x1
jax: 0.10.0
libtpu: 0.0.40
codegen_flags: <defaults>
</compile_context>

<pallas_src>
import functools

import numpy as np
import jax
import jax.numpy as jnp
from jax.experimental import pallas as pl
from jax.experimental.pallas import tpu as pltpu


def _block_kernel(Bt, H, Kx, Ko, has_skip,
                  x_ref, a1_ref, b1_ref, a2_ref, out_ref, s_ref):
    """One grid step processes Bt batch elements.

    x_ref  : (Bt, H, Kx)          f32  input rows, (w, c) flattened on the lane axis
    a1_ref : (3, Kx, Ko)          bf16 banded conv1 slabs (one per kernel row)
    b1_ref : (1, Ko)              f32  conv1 bias tiled over w
    a2_ref : (3, Ko+Kx, Ko) bf16  conv2 slab stacked over skip slab along K   (has_skip)
             (3, Ko,    Ko) bf16  conv2 slab only                             (identity)
    out_ref: (Bt, H, Ko)          f32  lane-dense output rows (accumulated in place)
    s_ref  : (Bt, H+2, Ko+Kx)     bf16 VMEM scratch; lanes [0:Ko]=hidden, [Ko:Ko+Kx]=input
    """
    M = Bt * H
    Ks = Ko + Kx

    # ---- stage H-halo'd rows: only the 2 border rows are zeroed --------------------
    zrow = jnp.zeros((Bt, 1, Ks), s_ref.dtype)
    s_ref[:, 0:1, :] = zrow
    s_ref[:, H + 1:H + 2, :] = zrow
    s_ref[:, 1:H + 1, Ko:Ks] = x_ref[...].astype(s_ref.dtype)      # bf16 matmul copy of x

    # ---- conv1 + bias + ReLU: 3 banded dots, f32 accumulation ----------------------
    acc = jnp.zeros((M, Ko), jnp.float32)
    for kh in range(3):
        lhs = s_ref[:, kh:kh + H, Ko:Ks].reshape(M, Kx)             # bf16 (M, Kx)
        acc = acc + jnp.dot(lhs, a1_ref[kh], preferred_element_type=jnp.float32)
    h = jnp.maximum(acc + b1_ref[...], 0.0)                          # (M, Ko) f32

    # stage hidden rows next to the input rows (shared halo already zeroed)
    s_ref[:, 1:H + 1, 0:Ko] = h.astype(s_ref.dtype).reshape(Bt, H, Ko)

    # ---- conv2 (+ skip) accumulated straight into the f32 output block -------------
    if has_skip:
        # fused K = Ko + Kx dots: conv2 (hidden lanes) + skip conv (input lanes)
        lhs0 = s_ref[:, 0:H, :].reshape(M, Ks)
        out_ref[...] = jnp.dot(lhs0, a2_ref[0],
                               preferred_element_type=jnp.float32).reshape(Bt, H, Ko)
        for kh in range(1, 3):
            lhs = s_ref[:, kh:kh + H, :].reshape(M, Ks)
            out_ref[...] += jnp.dot(lhs, a2_ref[kh],
                                    preferred_element_type=jnp.float32).reshape(Bt, H, Ko)
    else:
        # identity skip: f32 residual add (Kx == Ko here), then conv2 dots
        out_ref[...] = x_ref[...]
        for kh in range(3):
            lhs = s_ref[:, kh:kh + H, 0:Ko].reshape(M, Ko)
            out_ref[...] += jnp.dot(lhs, a2_ref[kh],
                                    preferred_element_type=jnp.float32).reshape(Bt, H, Ko)


def _round_up(x, m):
    return (x + m - 1) // m * m


def _pick_bt(B, H):
    """Fold batch into the matmul M dim. Target M = bt*H ~ 256 (fills the 256-deep
    v6e/v7x MXU, >=128 for v5e) while keeping >= 2 grid steps whenever B >= 2 so the
    'parallel' grid axis can shard across v7x's two TensorCores."""
    divs = [d for d in range(1, B + 1) if B % d == 0]
    multi = [d for d in divs if B // d >= 2] or divs
    good = [d for d in multi if d * H <= 256]
    return max(good) if good else min(multi)


def _banded_slabs(w_hwio, W, ci_pad=None):
    """HWIO (3, 3, Ci, Co) -> (3, W*Cip, W*Co) bf16 banded slabs (Ci zero-padded to Cip).

    slab[kh][w_in*Cip + ci, w*Co + co] = w[kh, w_in - w + 1, ci, co]  for |w_in - w| <= 1,
    so  out_row[h] = sum_kh  x_row[h + kh - 1] @ slab[kh]  (rows flattened over (w, c)).
    """
    _, _, Ci, Co = w_hwio.shape
    Cip = Ci if ci_pad is None else ci_pad
    w = w_hwio if Cip == Ci else jnp.pad(w_hwio, ((0, 0), (0, 0), (0, Cip - Ci), (0, 0)))
    slabs = []
    for kh in range(3):
        a = jnp.zeros((W, Cip, W, Co), jnp.float32)
        for kw in range(3):
            dw = kw - 1
            lo, hi = max(0, -dw), min(W, W - dw)        # valid output columns
            w_out = np.arange(lo, hi)
            w_in = w_out + dw
            a = a.at[w_in, :, w_out, :].set(w[kh, kw])
        slabs.append(a.reshape(W * Cip, W * Co))
    return jnp.stack(slabs, axis=0).astype(jnp.bfloat16)


def block_forward(x_nchw, w1, b1, w2, w_skip=None, *, bt=None):
    """Block.forward: conv2(relu(conv1(x)+b1)) + skip(x). NCHW in / NCHW out (f32).

    w_skip=None means the PyTorch nn.Identity skip (requires n_in == n_out).
    """
    x = jnp.transpose(x_nchw, (0, 2, 3, 1)).astype(jnp.float32)    # NHWC, f32
    B, H, W, Cin = x.shape
    Cout = w1.shape[-1]
    has_skip = w_skip is not None
    if not has_skip:
        assert Cin == Cout, "identity skip requires n_in == n_out"

    # Pad Cin to a multiple of 8 (lane-dense x rows / LHS vregs) when there is a skip
    # conv; the identity case needs Kx == Ko for the direct f32 residual add.
    Cip = _round_up(Cin, 8) if has_skip else Cin
    if Cip != Cin:
        x = jnp.pad(x, ((0, 0), (0, 0), (0, 0), (0, Cip - Cin)))
    Kx, Ko = W * Cip, W * Cout

    if bt is None:
        bt = _pick_bt(B, H)
    assert B % bt == 0
    grid = (B // bt,)

    x_rows = x.reshape(B, H, Kx)                                    # lane axis = (w, c)

    a1 = _banded_slabs(w1, W, ci_pad=Cip)                           # (3, Kx, Ko)
    b1row = jnp.tile(b1.astype(jnp.float32), W).reshape(1, Ko)      # (1, Ko)
    a2 = _banded_slabs(w2, W)                                       # (3, Ko, Ko)
    if has_skip:                                                    # stack conv2|skip on K
        a2 = jnp.concatenate([a2, _banded_slabs(w_skip, W, ci_pad=Cip)], axis=1)
    K2 = a2.shape[1]

    kernel = functools.partial(_block_kernel, bt, H, Kx, Ko, has_skip)

    y_rows = pl.pallas_call(
        kernel,
        out_shape=jax.ShapeDtypeStruct((B, H, Ko), jnp.float32),
        grid_spec=pltpu.PrefetchScalarGridSpec(
            num_scalar_prefetch=0,
            grid=grid,
            in_specs=[
                pl.BlockSpec((bt, H, Kx), lambda g: (g, 0, 0)),
                pl.BlockSpec((3, Kx, Ko), lambda g: (0, 0, 0)),
                pl.BlockSpec((1, Ko), lambda g: (0, 0)),
                pl.BlockSpec((3, K2, Ko), lambda g: (0, 0, 0)),
            ],
            out_specs=pl.BlockSpec((bt, H, Ko), lambda g: (g, 0, 0)),
            scratch_shapes=[
                # combined H-halo'd rows: lanes [0:Ko]=hidden, [Ko:Ko+Kx]=input (bf16)
                pltpu.VMEM((bt, H + 2, Ko + Kx), jnp.bfloat16),
            ],
        ),
        compiler_params=pltpu.CompilerParams(
            dimension_semantics=("parallel",),
            vmem_limit_bytes=32 * 1024 * 1024),
    )(x_rows, a1, b1row, a2)

    y = y_rows.reshape(B, H, W, Cout)
    return jnp.transpose(y, (0, 3, 1, 2))                           # -> NCHW


# ----------------------------- reference & test harness ------------------------------

def _conv_ref(x_nhwc, w_hwio, b=None):
    y = jax.lax.conv_general_dilated(
        x_nhwc, w_hwio, window_strides=(1, 1), padding="SAME",
        dimension_numbers=("NHWC", "HWIO", "NHWC"))
    return y if b is None else y + b


def block_reference(x_nchw, w1, b1, w2, w_skip=None):
    x = jnp.transpose(x_nchw, (0, 2, 3, 1)).astype(jnp.float32)
    h = jnp.maximum(_conv_ref(x, w1, b1), 0.0)
    skip = x if w_skip is None else _conv_ref(x, w_skip)
    y = _conv_ref(h, w2) + skip
    return jnp.transpose(y, (0, 3, 1, 2))


def make_params(key, n_in, n_out):
    k1, k2, k3, k4 = jax.random.split(key, 4)
    w1 = jax.random.normal(k1, (3, 3, n_in, n_out), jnp.float32) * 0.1
    b1 = jax.random.normal(k2, (n_out,), jnp.float32) * 0.1
    w2 = jax.random.normal(k3, (3, 3, n_out, n_out), jnp.float32) * 0.1
    # nn.Identity skip when n_in == n_out -> no skip weight (direct residual add)
    w_skip = None if n_in == n_out else (
        jax.random.normal(k4, (3, 3, n_in, n_out), jnp.float32) * 0.1)
    return w1, b1, w2, w_skip


if __name__ == "__main__":
    key = jax.random.PRNGKey(0)
    kx, kp, kp2 = jax.random.split(key, 3)

    B, n_in, n_out, H, W = 2, 4, 8, 16, 16
    x = jax.random.normal(kx, (B, n_in, H, W), jnp.float32)        # NCHW, like PyTorch
    w1, b1, w2, w_skip = make_params(kp, n_in, n_out)

    y = jax.block_until_ready(block_forward(x, w1, b1, w2, w_skip))
    y_ref = jax.block_until_ready(block_reference(x, w1, b1, w2, w_skip))
    assert y.shape == (B, n_out, H, W)
    # bf16 MXU operands vs f32 reference -> loosened tolerance
    assert float(jnp.max(jnp.abs(y - y_ref))) < 5e-2

    # identity-skip specialization (n_in == n_out): skip is a direct f32 residual add
    w1b, b1b, w2b, wsb = make_params(kp2, n_out, n_out)
    x2 = jax.random.normal(kx, (B, n_out, H, W), jnp.float32)
    y2 = jax.block_until_ready(block_forward(x2, w1b, b1b, w2b, wsb))
    y2_ref = jax.block_until_ready(block_reference(x2, w1b, b1b, w2b, wsb))
    assert y2.shape == (B, n_out, H, W)
    assert float(jnp.max(jnp.abs(y2 - y2_ref))) < 5e-2

    print("KERNEL_OK")
</pallas_src>

<mosaic_0001>
module attributes {stable_mosaic.version = 11 : i64} {
  func.func @_block_kernel(%arg0: i32, %arg1: memref<1x16x128xf32, #tpu.memory_space<vmem>>, %arg2: memref<3x128x128xbf16, #tpu.memory_space<vmem>>, %arg3: memref<1x128xf32, #tpu.memory_space<vmem>>, %arg4: memref<3x256x128xbf16, #tpu.memory_space<vmem>>, %arg5: memref<1x16x128xf32, #tpu.memory_space<vmem>>, %arg6: memref<1x18x256xbf16, #tpu.memory_space<vmem>>) attributes {dimension_semantics = [#tpu.dimension_semantics<parallel>], iteration_bounds = array<i64: 2>, scalar_prefetch = 0 : i64, scratch_operands = 1 : i64, tpu.core_type = #tpu.core_type<tc>, window_params = [{transform_indices = @transform_0, window_bounds = array<i64: 1, 16, 128>}, {pipeline_mode = #tpu.pipeline_mode<synchronous>, transform_indices = @transform_1, window_bounds = array<i64: 3, 128, 128>}, {pipeline_mode = #tpu.pipeline_mode<synchronous>, transform_indices = @transform_2, window_bounds = array<i64: 1, 128>}, {pipeline_mode = #tpu.pipeline_mode<synchronous>, transform_indices = @transform_3, window_bounds = array<i64: 3, 256, 128>}, {transform_indices = @transform_4, window_bounds = array<i64: 1, 16, 128>}]} {
    %cst = arith.constant 0.000000e+00 : bf16
    %0 = vector.broadcast %cst : bf16 to vector<1x1x256xbf16>
    %c0 = arith.constant 0 : index
    %c0_0 = arith.constant 0 : index
    %c0_1 = arith.constant 0 : index
    %1 = vector.load %arg6[%c0, %c0_0, %c0_1] : memref<1x18x256xbf16, #tpu.memory_space<vmem>>, vector<1x1x256xbf16>
    tpu.vector_store %arg6[%c0, %c0_0, %c0_1], %0 {strides = array<i32>} : memref<1x18x256xbf16, #tpu.memory_space<vmem>>, vector<1x1x256xbf16>,
    %c0_2 = arith.constant 0 : index
    %c17 = arith.constant 17 : index
    %c0_3 = arith.constant 0 : index
    %2 = vector.load %arg6[%c0_2, %c17, %c0_3] : memref<1x18x256xbf16, #tpu.memory_space<vmem>>, vector<1x1x256xbf16>
    tpu.vector_store %arg6[%c0_2, %c17, %c0_3], %0 {strides = array<i32>} : memref<1x18x256xbf16, #tpu.memory_space<vmem>>, vector<1x1x256xbf16>,
    %c0_4 = arith.constant 0 : index
    %c0_5 = arith.constant 0 : index
    %c0_6 = arith.constant 0 : index
    %3 = vector.load %arg1[%c0_4, %c0_5, %c0_6] : memref<1x16x128xf32, #tpu.memory_space<vmem>>, vector<1x16x128xf32>
    %4 = arith.truncf %3 : vector<1x16x128xf32> to vector<1x16x128xbf16>
    %c0_7 = arith.constant 0 : index
    %c1 = arith.constant 1 : index
    %c128 = arith.constant 128 : index
    %5 = vector.load %arg6[%c0_7, %c1, %c128] : memref<1x18x256xbf16, #tpu.memory_space<vmem>>, vector<1x16x128xbf16>
    tpu.vector_store %arg6[%c0_7, %c1, %c128], %4 {strides = array<i32>} : memref<1x18x256xbf16, #tpu.memory_space<vmem>>, vector<1x16x128xbf16>,
    %cst_8 = arith.constant 0.000000e+00 : f32
    %6 = vector.broadcast %cst_8 : f32 to vector<16x128xf32>
    %c0_9 = arith.constant 0 : index
    %c0_10 = arith.constant 0 : index
    %c128_11 = arith.constant 128 : index
    %7 = vector.load %arg6[%c0_9, %c0_10, %c128_11] : memref<1x18x256xbf16, #tpu.memory_space<vmem>>, vector<1x16x128xbf16>
    %8 = vector.shape_cast %7 : vector<1x16x128xbf16> to vector<16x128xbf16>
    %c0_12 = arith.constant 0 : index
    %c0_13 = arith.constant 0 : index
    %c0_14 = arith.constant 0 : index
    %9 = vector.load %arg2[%c0_12, %c0_13, %c0_14] : memref<3x128x128xbf16, #tpu.memory_space<vmem>>, vector<1x128x128xbf16>
    %10 = vector.shape_cast %9 : vector<1x128x128xbf16> to vector<128x128xbf16>
    %cst_15 = arith.constant dense<0.000000e+00> : vector<16x128xf32>
    %11 = tpu.matmul %8, %10, %cst_15 {dimension_numbers = #tpu.dot_dimension_numbers<[1], [0], [0], [1], [0, 0, 1, 1], [], []>} : vector<16x128xbf16>, vector<128x128xbf16>, vector<16x128xf32> -> vector<16x128xf32>
    %12 = arith.addf %6, %11 : vector<16x128xf32>
    %c0_16 = arith.constant 0 : index
    %c1_17 = arith.constant 1 : index
    %c128_18 = arith.constant 128 : index
    %13 = vector.load %arg6[%c0_16, %c1_17, %c128_18] : memref<1x18x256xbf16, #tpu.memory_space<vmem>>, vector<1x16x128xbf16>
    %14 = vector.shape_cast %13 : vector<1x16x128xbf16> to vector<16x128xbf16>
    %c1_19 = arith.constant 1 : index
    %c0_20 = arith.constant 0 : index
    %c0_21 = arith.constant 0 : index
    %15 = vector.load %arg2[%c1_19, %c0_20, %c0_21] : memref<3x128x128xbf16, #tpu.memory_space<vmem>>, vector<1x128x128xbf16>
    %16 = vector.shape_cast %15 : vector<1x128x128xbf16> to vector<128x128xbf16>
    %cst_22 = arith.constant dense<0.000000e+00> : vector<16x128xf32>
    %17 = tpu.matmul %14, %16, %cst_22 {dimension_numbers = #tpu.dot_dimension_numbers<[1], [0], [0], [1], [0, 0, 1, 1], [], []>} : vector<16x128xbf16>, vector<128x128xbf16>, vector<16x128xf32> -> vector<16x128xf32>
    %18 = arith.addf %12, %17 : vector<16x128xf32>
    %c0_23 = arith.constant 0 : index
    %c2 = arith.constant 2 : index
    %c128_24 = arith.constant 128 : index
    %19 = vector.load %arg6[%c0_23, %c2, %c128_24] : memref<1x18x256xbf16, #tpu.memory_space<vmem>>, vector<1x16x128xbf16>
    %20 = vector.shape_cast %19 : vector<1x16x128xbf16> to vector<16x128xbf16>
    %c2_25 = arith.constant 2 : index
    %c0_26 = arith.constant 0 : index
    %c0_27 = arith.constant 0 : index
    %21 = vector.load %arg2[%c2_25, %c0_26, %c0_27] : memref<3x128x128xbf16, #tpu.memory_space<vmem>>, vector<1x128x128xbf16>
    %22 = vector.shape_cast %21 : vector<1x128x128xbf16> to vector<128x128xbf16>
    %cst_28 = arith.constant dense<0.000000e+00> : vector<16x128xf32>
    %23 = tpu.matmul %20, %22, %cst_28 {dimension_numbers = #tpu.dot_dimension_numbers<[1], [0], [0], [1], [0, 0, 1, 1], [], []>} : vector<16x128xbf16>, vector<128x128xbf16>, vector<16x128xf32> -> vector<16x128xf32>
    %24 = arith.addf %18, %23 : vector<16x128xf32>
    %c0_29 = arith.constant 0 : index
    %c0_30 = arith.constant 0 : index
    %25 = vector.load %arg3[%c0_29, %c0_30] : memref<1x128xf32, #tpu.memory_space<vmem>>, vector<1x128xf32>
    %26 = vector.broadcast %25 : vector<1x128xf32> to vector<16x128xf32>
    %27 = arith.addf %24, %26 : vector<16x128xf32>
    %cst_31 = arith.constant 0.000000e+00 : f32
    %28 = vector.broadcast %cst_31 : f32 to vector<16x128xf32>
    %29 = arith.maximumf %27, %28 : vector<16x128xf32>
    %30 = arith.truncf %29 : vector<16x128xf32> to vector<16x128xbf16>
    %31 = vector.shape_cast %30 : vector<16x128xbf16> to vector<1x16x128xbf16>
    %c0_32 = arith.constant 0 : index
    %c1_33 = arith.constant 1 : index
    %c0_34 = arith.constant 0 : index
    %32 = vector.load %arg6[%c0_32, %c1_33, %c0_34] : memref<1x18x256xbf16, #tpu.memory_space<vmem>>, vector<1x16x128xbf16>
    tpu.vector_store %arg6[%c0_32, %c1_33, %c0_34], %31 {strides = array<i32>} : memref<1x18x256xbf16, #tpu.memory_space<vmem>>, vector<1x16x128xbf16>,
    %c0_35 = arith.constant 0 : index
    %c0_36 = arith.constant 0 : index
    %c0_37 = arith.constant 0 : index
    %33 = vector.load %arg6[%c0_35, %c0_36, %c0_37] : memref<1x18x256xbf16, #tpu.memory_space<vmem>>, vector<1x16x256xbf16>
    %34 = vector.shape_cast %33 : vector<1x16x256xbf16> to vector<16x256xbf16>
    %c0_38 = arith.constant 0 : index
    %c0_39 = arith.constant 0 : index
    %c0_40 = arith.constant 0 : index
    %35 = vector.load %arg4[%c0_38, %c0_39, %c0_40] : memref<3x256x128xbf16, #tpu.memory_space<vmem>>, vector<1x256x128xbf16>
    %36 = vector.shape_cast %35 : vector<1x256x128xbf16> to vector<256x128xbf16>
    %cst_41 = arith.constant dense<0.000000e+00> : vector<16x128xf32>
    %37 = tpu.matmul %34, %36, %cst_41 {dimension_numbers = #tpu.dot_dimension_numbers<[1], [0], [0], [1], [0, 0, 1, 1], [], []>} : vector<16x256xbf16>, vector<256x128xbf16>, vector<16x128xf32> -> vector<16x128xf32>
    %38 = vector.shape_cast %37 : vector<16x128xf32> to vector<1x16x128xf32>
    %c0_42 = arith.constant 0 : index
    %c0_43 = arith.constant 0 : index
    %c0_44 = arith.constant 0 : index
    %39 = vector.load %arg5[%c0_42, %c0_43, %c0_44] : memref<1x16x128xf32, #tpu.memory_space<vmem>>, vector<1x16x128xf32>
    tpu.vector_store %arg5[%c0_42, %c0_43, %c0_44], %38 {strides = array<i32>} : memref<1x16x128xf32, #tpu.memory_space<vmem>>, vector<1x16x128xf32>,
    %c0_45 = arith.constant 0 : index
    %c1_46 = arith.constant 1 : index
    %c0_47 = arith.constant 0 : index
    %40 = vector.load %arg6[%c0_45, %c1_46, %c0_47] : memref<1x18x256xbf16, #tpu.memory_space<vmem>>, vector<1x16x256xbf16>
    %41 = vector.shape_cast %40 : vector<1x16x256xbf16> to vector<16x256xbf16>
    %c0_48 = arith.constant 0 : index
    %c0_49 = arith.constant 0 : index
    %c0_50 = arith.constant 0 : index
    %42 = vector.load %arg5[%c0_48, %c0_49, %c0_50] : memref<1x16x128xf32, #tpu.memory_space<vmem>>, vector<1x16x128xf32>
    %c1_51 = arith.constant 1 : index
    %c0_52 = arith.constant 0 : index
    %c0_53 = arith.constant 0 : index
    %43 = vector.load %arg4[%c1_51, %c0_52, %c0_53] : memref<3x256x128xbf16, #tpu.memory_space<vmem>>, vector<1x256x128xbf16>
    %44 = vector.shape_cast %43 : vector<1x256x128xbf16> to vector<256x128xbf16>
    %cst_54 = arith.constant dense<0.000000e+00> : vector<16x128xf32>
    %45 = tpu.matmul %41, %44, %cst_54 {dimension_numbers = #tpu.dot_dimension_numbers<[1], [0], [0], [1], [0, 0, 1, 1], [], []>} : vector<16x256xbf16>, vector<256x128xbf16>, vector<16x128xf32> -> vector<16x128xf32>
    %46 = vector.shape_cast %45 : vector<16x128xf32> to vector<1x16x128xf32>
    %47 = arith.addf %42, %46 : vector<1x16x128xf32>
    %c0_55 = arith.constant 0 : index
    %c0_56 = arith.constant 0 : index
    %c0_57 = arith.constant 0 : index
    %48 = vector.load %arg5[%c0_55, %c0_56, %c0_57] : memref<1x16x128xf32, #tpu.memory_space<vmem>>, vector<1x16x128xf32>
    tpu.vector_store %arg5[%c0_55, %c0_56, %c0_57], %47 {strides = array<i32>} : memref<1x16x128xf32, #tpu.memory_space<vmem>>, vector<1x16x128xf32>,
    %c0_58 = arith.constant 0 : index
    %c2_59 = arith.constant 2 : index
    %c0_60 = arith.constant 0 : index
    %49 = vector.load %arg6[%c0_58, %c2_59, %c0_60] : memref<1x18x256xbf16, #tpu.memory_space<vmem>>, vector<1x16x256xbf16>
    %50 = vector.shape_cast %49 : vector<1x16x256xbf16> to vector<16x256xbf16>
    %c0_61 = arith.constant 0 : index
    %c0_62 = arith.constant 0 : index
    %c0_63 = arith.constant 0 : index
    %51 = vector.load %arg5[%c0_61, %c0_62, %c0_63] : memref<1x16x128xf32, #tpu.memory_space<vmem>>, vector<1x16x128xf32>
    %c2_64 = arith.constant 2 : index
    %c0_65 = arith.constant 0 : index
    %c0_66 = arith.constant 0 : index
    %52 = vector.load %arg4[%c2_64, %c0_65, %c0_66] : memref<3x256x128xbf16, #tpu.memory_space<vmem>>, vector<1x256x128xbf16>
    %53 = vector.shape_cast %52 : vector<1x256x128xbf16> to vector<256x128xbf16>
    %cst_67 = arith.constant dense<0.000000e+00> : vector<16x128xf32>
    %54 = tpu.matmul %50, %53, %cst_67 {dimension_numbers = #tpu.dot_dimension_numbers<[1], [0], [0], [1], [0, 0, 1, 1], [], []>} : vector<16x256xbf16>, vector<256x128xbf16>, vector<16x128xf32> -> vector<16x128xf32>
    %55 = vector.shape_cast %54 : vector<16x128xf32> to vector<1x16x128xf32>
    %56 = arith.addf %51, %55 : vector<1x16x128xf32>
    %c0_68 = arith.constant 0 : index
    %c0_69 = arith.constant 0 : index
    %c0_70 = arith.constant 0 : index
    %57 = vector.load %arg5[%c0_68, %c0_69, %c0_70] : memref<1x16x128xf32, #tpu.memory_space<vmem>>, vector<1x16x128xf32>
    tpu.vector_store %arg5[%c0_68, %c0_69, %c0_70], %56 {strides = array<i32>} : memref<1x16x128xf32, #tpu.memory_space<vmem>>, vector<1x16x128xf32>,
    return
  }
  func.func @transform_0(%arg0: i32) -> (i32, i32, i32) {
    %c0_i32 = arith.constant 0 : i32
    %c0_i32_0 = arith.constant 0 : i32
    %c0_i32_1 = arith.constant 0 : i32
    return %arg0, %c0_i32, %c0_i32_0 : i32, i32, i32
  }
  func.func @transform_1(%arg0: i32) -> (i32, i32, i32) {
    %c0_i32 = arith.constant 0 : i32
    %c0_i32_0 = arith.constant 0 : i32
    %c0_i32_1 = arith.constant 0 : i32
    %c0_i32_2 = arith.constant 0 : i32
    return %c0_i32, %c0_i32_0, %c0_i32_1 : i32, i32, i32
  }
  func.func @transform_2(%arg0: i32) -> (i32, i32) {
    %c0_i32 = arith.constant 0 : i32
    %c0_i32_0 = arith.constant 0 : i32
    %c0_i32_1 = arith.constant 0 : i32
    return %c0_i32, %c0_i32_0 : i32, i32
  }
  func.func @transform_3(%arg0: i32) -> (i32, i32, i32) {
    %c0_i32 = arith.constant 0 : i32
    %c0_i32_0 = arith.constant 0 : i32
    %c0_i32_1 = arith.constant 0 : i32
    %c0_i32_2 = arith.constant 0 : i32
    return %c0_i32, %c0_i32_0, %c0_i32_1 : i32, i32, i32
  }
  func.func @transform_4(%arg0: i32) -> (i32, i32, i32) {
    %c0_i32 = arith.constant 0 : i32
    %c0_i32_0 = arith.constant 0 : i32
    %c0_i32_1 = arith.constant 0 : i32
    return %arg0, %c0_i32, %c0_i32_0 : i32, i32, i32
  }
}

</mosaic_0001>

<llo_original>
// kernel: tpu_custom_call.1
$region0: #{tpu_custom_call.1}
  #allocation0 [shape = 'u32[]', space=smem, size = 0x4, offset = 0x4, fixed_abs, tag = 'smem constant byte address 0x4 - core index']
  #allocation1 [shape = 'u32[144,128]{1,0:T(1,128)}', space=vmem, size = 0x12000, scoped, tag = 'internal scratch']
  #allocation2 [shape = 'bf16[1,18,256]{2,1,0:T(8,128)(2,1)}', space=vmem, size = 0x3000, scoped, tag = 'scratch operand']
  %s0 = inlined_call_operand.hbm [shape: f32[2,16,128], index: 0, kind: input, shape index: {}]
  %s1 = inlined_call_operand.hbm [shape: bf16[3,128,128], index: 1, kind: input, shape index: {}]
  %s2 = inlined_call_operand.vmem [shape: f32[1,128], index: 2, kind: input, shape index: {}]
  %s3 = inlined_call_operand.hbm [shape: bf16[3,256,128], index: 3, kind: input, shape index: {}]
  %s4 = inlined_call_operand.hbm [shape: f32[2,16,128], index: 4, kind: output, shape index: {}]
  %s5 = sld [smem:[#allocation0]]
  $region61: #{tpu_custom_call.1} parent=0
    _
  %s7 = ssub.s32 1, %s5
  %s8 = scalar_select 0, %s7, %s5
  $region1: #{tpu_custom_call.1} parent=0
    #allocation3 [shape = 'u8[16384]{0}', space=vmem, size = 0x4000, scoped, tag = 'input window, operand 0']
    #allocation4 [shape = 's32[2]{0}', space=sflag, size = 0x8, scoped, tag = 'scoped memory for tpu_custom_call.1']
    #allocation5 [shape = 's32[2]{0}', space=sflag, size = 0x8, scoped, tag = 'scoped memory for tpu_custom_call.1']
    #allocation6 [shape = 'u8[98304]{0}', space=vmem, size = 0x18000, scoped, tag = 'input window, operand 1, single buffered']
    #allocation7 [shape = 's32[1]{0}', space=sflag, size = 0x4, scoped, tag = 'scoped memory for tpu_custom_call.1']
    #allocation8 [shape = 'u8[196608]{0}', space=vmem, size = 0x30000, scoped, tag = 'input window, operand 3, single buffered']
    #allocation9 [shape = 'u8[16384]{0}', space=vmem, size = 0x4000, scoped, tag = 'output window, operand 0']
    %9 = vsyncpa [#allocation4], 0
    %s10 = scalar_lea.sflag [#allocation4], 1
    %11 = vsyncpa %s10, 0
    %12 = vsyncpa [#allocation7], 0
    %13 = vsyncpa [#allocation5], 0
    %s14 = scalar_lea.sflag [#allocation5], 1
    %15 = vsyncpa %s14, 0
    loop: start=0, step=1, limit=4
    $region2: #{tpu_custom_call.1} parent=1 // loop_pre_header
      _
    $region3: #{tpu_custom_call.1} parent=1 // loop_header
      %s17 = sphi 0, %s21
      %p18 = scmp.ge.s32.totalorder %s17, 4
      %s27 = sphi 0, %s29
      %s30 = sphi 0, %s27
      %s31 = sphi 0, %s30
      %s47 = sphi 0, %s31
      %s51 = sphi 0, %s51
      %s53 = sphi 0, %s51
      %s54 = sphi 0, %s53
      %s68 = sphi 0, %s54
      %s72 = sphi 0, %s72
      %s74 = sphi 0, %s72
      %s75 = sphi 0, %s74
      %s89 = sphi 0, %s75
      %s93 = sphi 0, %s93
      %s95 = sphi 0, %s93
      %s96 = sphi 0, %s95
      %s110 = sphi 0, %s96
      %s116 = sphi 0, %s118
      %s119 = sphi 0, %s116
      %s120 = sphi 0, %s119
      %s136 = sphi 0, %s120
    $region4: #{tpu_custom_call.1} parent=1 // loop_header_branch
      %20 = sbr.rel (%p18) target = $region8
    $region5: #{tpu_custom_call.1} parent=1 // loop_body
      %s22 = ssub.s32 %s17, 1
      %s23 = ssub.s32 %s17, 2
      %s24 = sadd.s32 %s17, 1
      %s25 = ssub.s32 %s17, %s24
      %p26 = scmp.eq.s32.totalorder %s25, 0
      %s28 = sadd.s32 %s27, 1
      %s29 = scalar_select %p26, %s27, %s28
      %p32 = pneg %p26
      %p33 = scmp.eq.s32.totalorder %s17, 1
      %p34 = por %p32, %p33
      %p35 = scmp.ne.s32.totalorder %s27, %s30
      %p36 = scmp.eq.s32.totalorder %s17, 0
      %p37 = por %p35, %p36
      %p38 = scmp.ne.s32.totalorder %s27, %s30
      %p39 = scmp.eq.s32.totalorder %s22, 1
      %p40 = por %p38, %p39
      %p41 = scmp.ne.s32.totalorder %s30, %s31
      %p42 = scmp.eq.s32.totalorder %s22, 0
      %p43 = por %p41, %p42
      %p44 = scmp.ne.s32.totalorder %s30, %s31
      %p45 = scmp.eq.s32.totalorder %s23, 1
      %p46 = por %p44, %p45
      %p48 = scmp.ne.s32.totalorder %s31, %s47
      %p49 = scmp.eq.s32.totalorder %s23, 0
      %p50 = por %p48, %p49
      %s52 = sadd.s32 %s51, 1
      %p55 = scmp.eq.s32.totalorder %s17, 1
      %p56 = scmp.ne.s32.totalorder %s51, %s53
      %p57 = scmp.eq.s32.totalorder %s17, 0
      %p58 = por %p56, %p57
      %p59 = scmp.ne.s32.totalorder %s51, %s53
      %p60 = scmp.eq.s32.totalorder %s22, 1
      %p61 = por %p59, %p60
      %p62 = scmp.ne.s32.totalorder %s53, %s54
      %p63 = scmp.eq.s32.totalorder %s22, 0
      %p64 = por %p62, %p63
      %p65 = scmp.ne.s32.totalorder %s53, %s54
      %p66 = scmp.eq.s32.totalorder %s23, 1
      %p67 = por %p65, %p66
      %p69 = scmp.ne.s32.totalorder %s54, %s68
      %p70 = scmp.eq.s32.totalorder %s23, 0
      %p71 = por %p69, %p70
      %s73 = sadd.s32 %s72, 1
      %p76 = scmp.eq.s32.totalorder %s17, 1
      %p77 = scmp.ne.s32.totalorder %s72, %s74
      %p78 = scmp.eq.s32.totalorder %s17, 0
      %p79 = por %p77, %p78
      %p80 = scmp.ne.s32.totalorder %s72, %s74
      %p81 = scmp.eq.s32.totalorder %s22, 1
      %p82 = por %p80, %p81
      %p83 = scmp.ne.s32.totalorder %s74, %s75
      %p84 = scmp.eq.s32.totalorder %s22, 0
      %p85 = por %p83, %p84
      %p86 = scmp.ne.s32.totalorder %s74, %s75
      %p87 = scmp.eq.s32.totalorder %s23, 1
      %p88 = por %p86, %p87
      %p90 = scmp.ne.s32.totalorder %s75, %s89
      %p91 = scmp.eq.s32.totalorder %s23, 0
      %p92 = por %p90, %p91
      %s94 = sadd.s32 %s93, 1
      %p97 = scmp.eq.s32.totalorder %s17, 1
      %p98 = scmp.ne.s32.totalorder %s93, %s95
      %p99 = scmp.eq.s32.totalorder %s17, 0
      %p100 = por %p98, %p99
      %p101 = scmp.ne.s32.totalorder %s93, %s95
      %p102 = scmp.eq.s32.totalorder %s22, 1
      %p103 = por %p101, %p102
      %p104 = scmp.ne.s32.totalorder %s95, %s96
      %p105 = scmp.eq.s32.totalorder %s22, 0
      %p106 = por %p104, %p105
      %p107 = scmp.ne.s32.totalorder %s95, %s96
      %p108 = scmp.eq.s32.totalorder %s23, 1
      %p109 = por %p107, %p108
      %p111 = scmp.ne.s32.totalorder %s96, %s110
      %p112 = scmp.eq.s32.totalorder %s23, 0
      %p113 = por %p111, %p112
      %s114 = ssub.s32 %s17, %s24
      %p115 = scmp.eq.s32.totalorder %s114, 0
      %s117 = sadd.s32 %s116, 1
      %s118 = scalar_select %p115, %s116, %s117
      %p121 = pneg %p115
      %p122 = scmp.eq.s32.totalorder %s17, 1
      %p123 = por %p121, %p122
      %p124 = scmp.ne.s32.totalorder %s116, %s119
      %p125 = scmp.eq.s32.totalorder %s17, 0
      %p126 = por %p124, %p125
      %p127 = scmp.ne.s32.totalorder %s116, %s119
      %p128 = scmp.eq.s32.totalorder %s22, 1
      %p129 = por %p127, %p128
      %p130 = scmp.ne.s32.totalorder %s119, %s120
      %p131 = scmp.eq.s32.totalorder %s22, 0
      %p132 = por %p130, %p131
      %p133 = scmp.ne.s32.totalorder %s119, %s120
      %p134 = scmp.eq.s32.totalorder %s23, 1
      %p135 = por %p133, %p134
      %p137 = scmp.ne.s32.totalorder %s120, %s136
      %p138 = scmp.eq.s32.totalorder %s23, 0
      %p139 = por %p137, %p138
      %p140 = scmp.le.s32.totalorder 1, %s17
      %p141 = scmp.lt.s32.totalorder %s17, 3
      %p142 = pnand %p140, %p141
      %p143 = pneg %p142
      // Predicated region
      $region9: #{tpu_custom_call.1} parent=5 // pred_check
        _
      $region10: #{tpu_custom_call.1} parent=5 // pred_check_branch
        %145 = sbr.rel (%p142) target = $region12
      $region11: #{tpu_custom_call.1} parent=5 // pred_region
        %s146 = ssub.s32 %s17, 1
        // Predicated region
        $region13: #{tpu_custom_call.1} parent=11 // pred_check
          %p147 = pneg %p64
        $region14: #{tpu_custom_call.1} parent=11 // pred_check_branch
          %149 = sbr.rel (%p147) target = $region16
        $region15: #{tpu_custom_call.1} parent=11 // pred_region
          %s151 = ssub.s32 3072, 3072
          %152 = vsyncadd [#allocation7], %s151
          %s153 = sshll.u32 [#allocation6], 4
          %s154 = int_to_ptr.vmem [resolvable:$true] %s153
          %159 = dma.hbm_to_vmem [thread:$0]  %s1, 3072, %s154, [#allocation7], 64, 64, 4
        $region16: #{tpu_custom_call.1} parent=11 // pred_fallthru
          _
        // Predicated region
        $region17: #{tpu_custom_call.1} parent=11 // pred_check
          %p160 = pneg %p85
        $region18: #{tpu_custom_call.1} parent=11 // pred_check_branch
          %162 = sbr.rel (%p160) target = $region20
        $region19: #{tpu_custom_call.1} parent=11 // pred_region
          _
        $region20: #{tpu_custom_call.1} parent=11 // pred_fallthru
          _
        // Predicated region
        $region21: #{tpu_custom_call.1} parent=11 // pred_check
          %p163 = pneg %p106
        $region22: #{tpu_custom_call.1} parent=11 // pred_check_branch
          %165 = sbr.rel (%p163) target = $region24
        $region23: #{tpu_custom_call.1} parent=11 // pred_region
          %s167 = ssub.s32 6144, 6144
          %168 = vsyncadd [#allocation7], %s167
          %s169 = sshll.u32 [#allocation8], 4
          %s170 = int_to_ptr.vmem [resolvable:$true] %s169
          %175 = dma.hbm_to_vmem [thread:$0]  %s3, 6144, %s170, [#allocation7], 64, 64, 4
        $region24: #{tpu_custom_call.1} parent=11 // pred_fallthru
          _
      $region12: #{tpu_custom_call.1} parent=5 // pred_fallthru
        _
      %p176 = scmp.lt.s32.totalorder %s17, 2
      // Predicated region
      $region25: #{tpu_custom_call.1} parent=5 // pred_check
        %p177 = pneg %p176
      $region26: #{tpu_custom_call.1} parent=5 // pred_check_branch
        %179 = sbr.rel (%p177) target = $region28
      $region27: #{tpu_custom_call.1} parent=5 // pred_region
        // Predicated region
        $region29: #{tpu_custom_call.1} parent=27 // pred_check
          %p180 = pneg %p37
        $region30: #{tpu_custom_call.1} parent=27 // pred_check_branch
          %182 = sbr.rel (%p180) target = $region32
        $region31: #{tpu_custom_call.1} parent=27 // pred_region
          %s183 = sand.u32 %s27, 1
          %s184 = scalar_lea.sflag [#allocation4], %s183
          %s185 = sand.u32 %s27, 1
          %s186 = smul.addr %s185, 16
          %s187 = scalar_lea.vmem [#allocation3], %s186
          %s189 = ssub.s32 256, 256
          %190 = vsyncadd %s184, %s189
          %s191 = smul.addr %s17, 2
          %s192 = smul.addr %s191, 128
          %s193 = scalar_lea.hbm %s0, %s192
          %s194 = sshll.u32 %s187, 4
          %s195 = int_to_ptr.vmem [resolvable:$true] %s194
          %200 = dma.hbm_to_vmem [thread:$0]  %s193, 256, %s195, %s184, 128, 128, 8
        $region32: #{tpu_custom_call.1} parent=27 // pred_fallthru
          _
      $region28: #{tpu_custom_call.1} parent=5 // pred_fallthru
        _
      %p201 = scmp.le.s32.totalorder 1, %s17
      %p202 = scmp.lt.s32.totalorder %s17, 3
      %p203 = pnand %p201, %p202
      %p204 = pneg %p203
      // Predicated region
      $region33: #{tpu_custom_call.1} parent=5 // pred_check
        _
      $region34: #{tpu_custom_call.1} parent=5 // pred_check_branch
        %206 = sbr.rel (%p203) target = $region36
      $region35: #{tpu_custom_call.1} parent=5 // pred_region
        %s207 = ssub.s32 %s17, 1
        %s208 = sand.u32 %s30, 1
        %s209 = scalar_lea.sflag [#allocation4], %s208
        %s210 = sand.u32 %s30, 1
        %s211 = smul.addr %s210, 16
        %s212 = scalar_lea.vmem [#allocation3], %s211
        // Predicated region
        $region37: #{tpu_custom_call.1} parent=35 // pred_check
          %p213 = pneg %p43
        $region38: #{tpu_custom_call.1} parent=35 // pred_check_branch
          %215 = sbr.rel (%p213) target = $region40
        $region39: #{tpu_custom_call.1} parent=35 // pred_region
          %216 = dma.done %s209, 256
        $region40: #{tpu_custom_call.1} parent=35 // pred_fallthru
          _
        // Predicated region
        $region41: #{tpu_custom_call.1} parent=35 // pred_check
          %p217 = pneg %p64
        $region42: #{tpu_custom_call.1} parent=35 // pred_check_branch
          %219 = sbr.rel (%p217) target = $region44
        $region43: #{tpu_custom_call.1} parent=35 // pred_region
          %220 = dma.done [#allocation7], 3072
        $region44: #{tpu_custom_call.1} parent=35 // pred_fallthru
          _
        // Predicated region
        $region45: #{tpu_custom_call.1} parent=35 // pred_check
          %p221 = pneg %p106
        $region46: #{tpu_custom_call.1} parent=35 // pred_check_branch
          %223 = sbr.rel (%p221) target = $region48
        $region47: #{tpu_custom_call.1} parent=35 // pred_region
          %224 = dma.done [#allocation7], 6144
        $region48: #{tpu_custom_call.1} parent=35 // pred_fallthru
          _
        %s225 = sand.u32 %s30, 1
        %s226 = scalar_lea.sflag [#allocation4], %s225
        %s227 = sand.u32 %s30, 1
        %s228 = smul.addr %s227, 16
        %s229 = scalar_lea.vmem [#allocation3], %s228
        %p230 = pneg %p43
        %p231 = pneg %p40
        %p232 = pneg %p64
        %p233 = pneg %p61
        %p234 = pneg %p85
        %p235 = pneg %p82
        %p236 = pneg %p106
        %p237 = pneg %p103
        %p238 = pneg %p132
        %p239 = pneg %p129
        %s240 = sand.u32 %s119, 1
        %s241 = scalar_lea.sflag [#allocation5], %s240
        %s242 = sand.u32 %s119, 1
        %s243 = smul.addr %s242, 16
        %s244 = scalar_lea.vmem [#allocation9], %s243
        %vm246 = vcmask 1040384
        %vm247 = vsmask.f32 256
        %vm248 = vmand %vm246, %vm247
        %vm249 = vcmask 1044484
        %vm250 = vsmask.f32 4352
        %vm251 = vmand %vm249, %vm250
        %vm252 = vmor %vm251, %vm248
        %v253 = vld [vmem:[#allocation2] sm:$0x11]
        %v254 = vsel %vm252, 0, %v253
        %255 = vst [vmem:[#allocation2] sm:$0x11] %v254
        %vm256 = vsmask.f32 7938
        %vm257 = vmand %vm246, %vm256
        %vm258 = vsmask.f32 7954
        %vm259 = vmand %vm249, %vm258
        %vm260 = vmor %vm259, %vm257
        %v261 = vld [vmem:[#allocation2 + $0x10] sm:$0x11]
        %v262 = vsel %vm260, 0, %v261
        %263 = vst [vmem:[#allocation2 + $0x10] sm:$0x11] %v262
        %v264 = vld [vmem:[%s212] sm:$0xff]
        %v265 = vld [vmem:[%s212 + $0x8] sm:$0xff]
        %v266 = vpack.c.bf16 %v265, %v264
        %v268 = vunpack.c.l.b16 %v266
        %v269 = vunpack.c.h.b16 %v266
        %v270 = vpack.c.b16 %v268, %v268
        %v271 = vpack.c.b16 %v269, %v269
        %vm272 = vsmask.f32 4368
        %vm273 = vmor %vm247, %vm272
        %v275 = vshrl.u32 %v270, 16
        %v277 = vrot.slane %v275, 7
        %v278 = vshll.u32 %v270, 16
        %v280 = vor.u32 %v277, %v278
        %v281 = vrot.slane %v277, 4
        %v283 = vshrl.u32 %v271, 16
        %v285 = vrot.slane %v283, 7
        %v286 = vshll.u32 %v271, 16
        %v288 = vor.u32 %v285, %v286
        %v289 = vsel %vm273, %v281, %v288
        %v290 = vrot.slane %v285, 4
        %vm294 = vcmask 1043456
        %vm295 = vmand %vm294, %vm256
        %v296 = vld [vmem:[#allocation2 + $0x4] sm:$0xf]
        %v297 = vsel %vm295, %v280, %v296
        %298 = vst [vmem:[#allocation2 + $0x4] sm:$0xf] %v297
        %299 = vst [vmem:[#allocation2 + $0xc] sm:$0xf] %v289
        %v300 = vld [vmem:[#allocation2 + $0x14] sm:$0x1]
        %v301 = vsel %vm248, %v290, %v300
        %302 = vst [vmem:[#allocation2 + $0x14] sm:$0x1] %v301
        %v303 = vld [vmem:[#allocation2 + $0x4] sm:$0xf]
        %v304 = vld [vmem:[#allocation2 + $0xc] sm:$0xf]
        %v305 = vld [vmem:[#allocation6] sm:$0xf]
        %v306 = vld [vmem:[#allocation6 + $0x4] sm:$0xf]
        %v307 = vld [vmem:[#allocation6 + $0x8] sm:$0xf]
        %v308 = vld [vmem:[#allocation6 + $0xc] sm:$0xf]
        %v309 = vld [vmem:[#allocation6 + $0x10] sm:$0xf]
        %v310 = vld [vmem:[#allocation6 + $0x14] sm:$0xf]
        %v311 = vld [vmem:[#allocation6 + $0x18] sm:$0xf]
        %v312 = vld [vmem:[#allocation6 + $0x1c] sm:$0xf]
        %v313 = vld [vmem:[#allocation6 + $0x20] sm:$0xf]
        %v314 = vld [vmem:[#allocation6 + $0x24] sm:$0xf]
        %v315 = vld [vmem:[#allocation6 + $0x28] sm:$0xf]
        %v316 = vld [vmem:[#allocation6 + $0x2c] sm:$0xf]
        %v317 = vld [vmem:[#allocation6 + $0x30] sm:$0xf]
        %v318 = vld [vmem:[#allocation6 + $0x34] sm:$0xf]
        %v319 = vld [vmem:[#allocation6 + $0x38] sm:$0xf]
        %v320 = vld [vmem:[#allocation6 + $0x3c] sm:$0xf]
        %v321 = vld [vmem:[#allocation2 + $0x14] sm:$0x1]
        %s322 = scalar_lea.vmem [#allocation6], 64
        %v323 = vld [vmem:[%s322] sm:$0xf]
        %v324 = vld [vmem:[%s322 + $0x4] sm:$0xf]
        %v325 = vld [vmem:[%s322 + $0x8] sm:$0xf]
        %v326 = vld [vmem:[%s322 + $0xc] sm:$0xf]
        %v327 = vld [vmem:[%s322 + $0x10] sm:$0xf]
        %v328 = vld [vmem:[%s322 + $0x14] sm:$0xf]
        %v329 = vld [vmem:[%s322 + $0x18] sm:$0xf]
        %v330 = vld [vmem:[%s322 + $0x1c] sm:$0xf]
        %v331 = vld [vmem:[%s322 + $0x20] sm:$0xf]
        %v332 = vld [vmem:[%s322 + $0x24] sm:$0xf]
        %v333 = vld [vmem:[%s322 + $0x28] sm:$0xf]
        %v334 = vld [vmem:[%s322 + $0x2c] sm:$0xf]
        %v335 = vld [vmem:[%s322 + $0x30] sm:$0xf]
        %v336 = vld [vmem:[%s322 + $0x34] sm:$0xf]
        %v337 = vld [vmem:[%s322 + $0x38] sm:$0xf]
        %v338 = vld [vmem:[%s322 + $0x3c] sm:$0xf]
        %v342 = vunpack.c.l.b16 %v303
        %v343 = vunpack.c.l.b16 %v304
        %v344 = vunpack.c.l.b16 %v321
        %v345 = vpack.c.b16 %v343, %v342
        %v346 = vpack.c.b16 %v344, %v344
        %vm347 = vsmask.f32 7424
        %v349 = vshrl.u32 %v345, 16
        %v351 = vshll.u32 %v345, 16
        %v353 = vrot.slane %v351, 1
        %v354 = vor.u32 %v349, %v353
        %v356 = vshll.u32 %v346, 16
        %v358 = vrot.slane %v356, 1
        %v359 = vsel %vm347, %v354, %v358
        %v377 = vunpack.c.l.b16 %v323
        %v378 = vunpack.c.l.b16 %v324
        %v379 = vunpack.c.l.b16 %v325
        %v380 = vunpack.c.l.b16 %v326
        %v381 = vunpack.c.l.b16 %v327
        %v382 = vunpack.c.l.b16 %v328
        %v383 = vunpack.c.l.b16 %v329
        %v384 = vunpack.c.l.b16 %v330
        %v385 = vunpack.c.l.b16 %v331
        %v386 = vunpack.c.l.b16 %v332
        %v387 = vunpack.c.l.b16 %v333
        %v388 = vunpack.c.l.b16 %v334
        %v389 = vunpack.c.l.b16 %v335
        %v390 = vunpack.c.l.b16 %v336
        %v391 = vunpack.c.l.b16 %v337
        %v392 = vunpack.c.l.b16 %v338
        %v393 = vpack.c.b16 %v378, %v377
        %v394 = vpack.c.b16 %v380, %v379
        %v395 = vpack.c.b16 %v382, %v381
        %v396 = vpack.c.b16 %v384, %v383
        %v397 = vpack.c.b16 %v386, %v385
        %v398 = vpack.c.b16 %v388, %v387
        %v399 = vpack.c.b16 %v390, %v389
        %v400 = vpack.c.b16 %v392, %v391
        %409 = vmatprep.subr.bf16.mxu0 0
        %410 = vmatpush1.bf16.msra.mxu0 %v393
        %411 = vmatprep.subr.bf16.mxu0 0
        %412 = vmatpush1.bf16.msra.mxu0 %v394
        %413 = vmatprep.subr.bf16.mxu0 0
        %414 = vmatpush1.bf16.msra.mxu0 %v395
        %415 = vmatprep.subr.bf16.mxu0 0
        %416 = vmatpush1.bf16.msra.mxu0 %v396
        %417 = vmatprep.subr.bf16.mxu0 0
        %418 = vmatpush1.bf16.msra.mxu0 %v397
        %419 = vmatprep.subr.bf16.mxu0 0
        %420 = vmatpush1.bf16.msra.mxu0 %v398
        %421 = vmatprep.subr.bf16.mxu0 0
        %422 = vmatpush1.bf16.msra.mxu0 %v399
        %423 = vmatprep.subr.bf16.mxu0 0
        %424 = vmatpush1.bf16.msra.mxu0 %v400
        %425 = vmatprep.subr.bf16.mxu0 0
        %426 = vmatpush1.bf16.msra.mxu0 0
        %427 = vmatprep.subr.bf16.mxu0 0
        %428 = vmatpush1.bf16.msra.mxu0 0
        %429 = vmatprep.subr.bf16.mxu0 0
        %430 = vmatpush1.bf16.msra.mxu0 0
        %431 = vmatprep.subr.bf16.mxu0 0
        %432 = vmatpush1.bf16.msra.mxu0 0
        %433 = vmatprep.subr.bf16.mxu0 0
        %434 = vmatpush1.bf16.msra.mxu0 0
        %435 = vmatprep.subr.bf16.mxu0 0
        %436 = vmatpush1.bf16.msra.mxu0 0
        %437 = vmatprep.subr.bf16.mxu0 0
        %438 = vmatpush1.bf16.msra.mxu0 0
        %439 = vmatprep.subr.bf16.mxu0 0
        %440 = vmatpush1.bf16.msra.mxu0 0
        %441 = vmatprep.mubr.bf16.mxu0 0
        %442 = vmatmul.mubr.bf16.gmra.mrb[0].mxu0 %v359
        %v443 = vpop.f32.mrb[0].mxu0
        %v444 = vadd.f32 0.0, %v443
        %v445 = vpop.f32.mrb[0].mxu0
        %v446 = vpop.f32.mrb[0].mxu0
        %v447 = vadd.f32 0.0, %v446
        %v448 = vpop.f32.mrb[0].mxu0
        %449 = vdwg.mxu0
        %v467 = vunpack.c.l.b16 %v305
        %v468 = vunpack.c.l.b16 %v306
        %v469 = vunpack.c.l.b16 %v307
        %v470 = vunpack.c.l.b16 %v308
        %v471 = vunpack.c.l.b16 %v309
        %v472 = vunpack.c.l.b16 %v310
        %v473 = vunpack.c.l.b16 %v311
        %v474 = vunpack.c.l.b16 %v312
        %v475 = vunpack.c.l.b16 %v313
        %v476 = vunpack.c.l.b16 %v314
        %v477 = vunpack.c.l.b16 %v315
        %v478 = vunpack.c.l.b16 %v316
        %v479 = vunpack.c.l.b16 %v317
        %v480 = vunpack.c.l.b16 %v318
        %v481 = vunpack.c.l.b16 %v319
        %v482 = vunpack.c.l.b16 %v320
        %v483 = vpack.c.b16 %v468, %v467
        %v484 = vpack.c.b16 %v470, %v469
        %v485 = vpack.c.b16 %v472, %v471
        %v486 = vpack.c.b16 %v474, %v473
        %v487 = vpack.c.b16 %v476, %v475
        %v488 = vpack.c.b16 %v478, %v477
        %v489 = vpack.c.b16 %v480, %v479
        %v490 = vpack.c.b16 %v482, %v481
        %499 = vmatprep.subr.bf16.mxu0 0
        %500 = vmatpush1.bf16.msra.mxu0 %v483
        %501 = vmatprep.subr.bf16.mxu0 0
        %502 = vmatpush1.bf16.msra.mxu0 %v484
        %503 = vmatprep.subr.bf16.mxu0 0
        %504 = vmatpush1.bf16.msra.mxu0 %v485
        %505 = vmatprep.subr.bf16.mxu0 0
        %506 = vmatpush1.bf16.msra.mxu0 %v486
        %507 = vmatprep.subr.bf16.mxu0 0
        %508 = vmatpush1.bf16.msra.mxu0 %v487
        %509 = vmatprep.subr.bf16.mxu0 0
        %510 = vmatpush1.bf16.msra.mxu0 %v488
        %511 = vmatprep.subr.bf16.mxu0 0
        %512 = vmatpush1.bf16.msra.mxu0 %v489
        %513 = vmatprep.subr.bf16.mxu0 0
        %514 = vmatpush1.bf16.msra.mxu0 %v490
        %515 = vmatprep.subr.bf16.mxu0 0
        %516 = vmatpush1.bf16.msra.mxu0 0
        %517 = vmatprep.subr.bf16.mxu0 0
        %518 = vmatpush1.bf16.msra.mxu0 0
        %519 = vmatprep.subr.bf16.mxu0 0
        %520 = vmatpush1.bf16.msra.mxu0 0
        %521 = vmatprep.subr.bf16.mxu0 0
        %522 = vmatpush1.bf16.msra.mxu0 0
        %523 = vmatprep.subr.bf16.mxu0 0
        %524 = vmatpush1.bf16.msra.mxu0 0
        %525 = vmatprep.subr.bf16.mxu0 0
        %526 = vmatpush1.bf16.msra.mxu0 0
        %527 = vmatprep.subr.bf16.mxu0 0
        %528 = vmatpush1.bf16.msra.mxu0 0
        %529 = vmatprep.subr.bf16.mxu0 0
        %530 = vmatpush1.bf16.msra.mxu0 0
        %531 = vmatprep.mubr.bf16.mxu0 0
        %532 = vmatmul.mubr.bf16.gmra.mrb[0].mxu0 %v345
        %v533 = vpop.f32.mrb[0].mxu0
        %v534 = vadd.f32 %v444, %v533
        %v535 = vpop.f32.mrb[0].mxu0
        %v536 = vpop.f32.mrb[0].mxu0
        %v537 = vadd.f32 %v447, %v536
        %v538 = vpop.f32.mrb[0].mxu0
        %539 = vdwg.mxu0
        %v540 = vld [vmem:[#allocation2 + $0x4] sm:$0xe]
        %s541 = scalar_lea.vmem [#allocation6], 128
        %v542 = vld [vmem:[%s541] sm:$0xf]
        %v543 = vld [vmem:[%s541 + $0x4] sm:$0xf]
        %v544 = vld [vmem:[%s541 + $0x8] sm:$0xf]
        %v545 = vld [vmem:[%s541 + $0xc] sm:$0xf]
        %v546 = vld [vmem:[%s541 + $0x10] sm:$0xf]
        %v547 = vld [vmem:[%s541 + $0x14] sm:$0xf]
        %v548 = vld [vmem:[%s541 + $0x18] sm:$0xf]
        %v549 = vld [vmem:[%s541 + $0x1c] sm:$0xf]
        %v550 = vld [vmem:[%s541 + $0x20] sm:$0xf]
        %v551 = vld [vmem:[%s541 + $0x24] sm:$0xf]
        %v552 = vld [vmem:[%s541 + $0x28] sm:$0xf]
        %v553 = vld [vmem:[%s541 + $0x2c] sm:$0xf]
        %v554 = vld [vmem:[%s541 + $0x30] sm:$0xf]
        %v555 = vld [vmem:[%s541 + $0x34] sm:$0xf]
        %v556 = vld [vmem:[%s541 + $0x38] sm:$0xf]
        %v557 = vld [vmem:[%s541 + $0x3c] sm:$0xf]
        %v559 = vunpack.c.l.b16 %v540
        %v560 = vpack.c.b16 %v343, %v559
        %vm561 = vcmask 1046528
        %v562 = vrot.slane %v560, 1
        %v563 = vrot.slane %v346, 1
        %v564 = vsel %vm561, %v562, %v563
        %v582 = vunpack.c.l.b16 %v542
        %v583 = vunpack.c.l.b16 %v543
        %v584 = vunpack.c.l.b16 %v544
        %v585 = vunpack.c.l.b16 %v545
        %v586 = vunpack.c.l.b16 %v546
        %v587 = vunpack.c.l.b16 %v547
        %v588 = vunpack.c.l.b16 %v548
        %v589 = vunpack.c.l.b16 %v549
        %v590 = vunpack.c.l.b16 %v550
        %v591 = vunpack.c.l.b16 %v551
        %v592 = vunpack.c.l.b16 %v552
        %v593 = vunpack.c.l.b16 %v553
        %v594 = vunpack.c.l.b16 %v554
        %v595 = vunpack.c.l.b16 %v555
        %v596 = vunpack.c.l.b16 %v556
        %v597 = vunpack.c.l.b16 %v557
        %v598 = vpack.c.b16 %v583, %v582
        %v599 = vpack.c.b16 %v585, %v584
        %v600 = vpack.c.b16 %v587, %v586
        %v601 = vpack.c.b16 %v589, %v588
        %v602 = vpack.c.b16 %v591, %v590
        %v603 = vpack.c.b16 %v593, %v592
        %v604 = vpack.c.b16 %v595, %v594
        %v605 = vpack.c.b16 %v597, %v596
        %614 = vmatprep.subr.bf16.mxu0 0
        %615 = vmatpush1.bf16.msra.mxu0 %v598
        %616 = vmatprep.subr.bf16.mxu0 0
        %617 = vmatpush1.bf16.msra.mxu0 %v599
        %618 = vmatprep.subr.bf16.mxu0 0
        %619 = vmatpush1.bf16.msra.mxu0 %v600
        %620 = vmatprep.subr.bf16.mxu0 0
        %621 = vmatpush1.bf16.msra.mxu0 %v601
        %622 = vmatprep.subr.bf16.mxu0 0
        %623 = vmatpush1.bf16.msra.mxu0 %v602
        %624 = vmatprep.subr.bf16.mxu0 0
        %625 = vmatpush1.bf16.msra.mxu0 %v603
        %626 = vmatprep.subr.bf16.mxu0 0
        %627 = vmatpush1.bf16.msra.mxu0 %v604
        %628 = vmatprep.subr.bf16.mxu0 0
        %629 = vmatpush1.bf16.msra.mxu0 %v605
        %630 = vmatprep.subr.bf16.mxu0 0
        %631 = vmatpush1.bf16.msra.mxu0 0
        %632 = vmatprep.subr.bf16.mxu0 0
        %633 = vmatpush1.bf16.msra.mxu0 0
        %634 = vmatprep.subr.bf16.mxu0 0
        %635 = vmatpush1.bf16.msra.mxu0 0
        %636 = vmatprep.subr.bf16.mxu0 0
        %637 = vmatpush1.bf16.msra.mxu0 0
        %638 = vmatprep.subr.bf16.mxu0 0
        %639 = vmatpush1.bf16.msra.mxu0 0
        %640 = vmatprep.subr.bf16.mxu0 0
        %641 = vmatpush1.bf16.msra.mxu0 0
        %642 = vmatprep.subr.bf16.mxu0 0
        %643 = vmatpush1.bf16.msra.mxu0 0
        %644 = vmatprep.subr.bf16.mxu0 0
        %645 = vmatpush1.bf16.msra.mxu0 0
        %646 = vmatprep.mubr.bf16.mxu0 0
        %647 = vmatmul.mubr.bf16.gmra.mrb[0].mxu0 %v564
        %v648 = vpop.f32.mrb[0].mxu0
        %v649 = vadd.f32 0.0, %v648
        %v650 = vpop.f32.mrb[0].mxu0
        %v651 = vpop.f32.mrb[0].mxu0
        %v652 = vadd.f32 0.0, %v651
        %v653 = vpop.f32.mrb[0].mxu0
        %654 = vdwg.mxu0
        %v655 = vadd.f32 %v534, %v649
        %v656 = vadd.f32 %v537, %v652
        %v657 = vld [vmem:[%s2] sm:$0x1]
        %v659 = vlaneseq
        %v660 = vshrl.u32 %v659, 7
        %v661 = vsub.s32 0, %v660
        %v662 = vrot.slane %v657, %v661
        %v664 = vadd.f32 %v655, %v662
        %v665 = vadd.f32 %v656, %v662
        %v666 = vmax.f32 %v664, 0.0
        %v667 = vmax.f32 %v665, 0.0
        %v668 = vpack.c.bf16 %v667, %v666
        %v670 = vunpack.c.l.b16 %v668
        %v671 = vunpack.c.h.b16 %v668
        %v672 = vpack.c.b16 %v670, %v670
        %v673 = vpack.c.b16 %v671, %v671
        %v675 = vshrl.u32 %v672, 16
        %v677 = vrot.slane %v675, 7
        %v678 = vshll.u32 %v672, 16
        %v680 = vor.u32 %v677, %v678
        %v681 = vrot.slane %v677, 4
        %v683 = vshrl.u32 %v673, 16
        %v685 = vrot.slane %v683, 7
        %v686 = vshll.u32 %v673, 16
        %v688 = vor.u32 %v685, %v686
        %v689 = vsel %vm273, %v681, %v688
        %v690 = vrot.slane %v685, 4
        %v694 = vld [vmem:[#allocation2] sm:$0xf]
        %v695 = vsel %vm295, %v680, %v694
        %696 = vst [vmem:[#allocation2] sm:$0xf] %v695
        %697 = vst [vmem:[#allocation2 + $0x8] sm:$0xf] %v689
        %v698 = vld [vmem:[#allocation2 + $0x10] sm:$0x1]
        %v699 = vsel %vm248, %v690, %v698
        %700 = vst [vmem:[#allocation2 + $0x10] sm:$0x1] %v699
        %v701 = vld [vmem:[#allocation2] sm:$0xff]
        %v702 = vld [vmem:[#allocation2 + $0x8] sm:$0xff]
        %v703 = vld [vmem:[#allocation8] sm:$0xf]
        %v704 = vld [vmem:[#allocation8 + $0x4] sm:$0xf]
        %v705 = vld [vmem:[#allocation8 + $0x8] sm:$0xf]
        %v706 = vld [vmem:[#allocation8 + $0xc] sm:$0xf]
        %v707 = vld [vmem:[#allocation8 + $0x10] sm:$0xf]
        %v708 = vld [vmem:[#allocation8 + $0x14] sm:$0xf]
        %v709 = vld [vmem:[#allocation8 + $0x18] sm:$0xf]
        %v710 = vld [vmem:[#allocation8 + $0x1c] sm:$0xf]
        %v711 = vld [vmem:[#allocation8 + $0x20] sm:$0xf]
        %v712 = vld [vmem:[#allocation8 + $0x24] sm:$0xf]
        %v713 = vld [vmem:[#allocation8 + $0x28] sm:$0xf]
        %v714 = vld [vmem:[#allocation8 + $0x2c] sm:$0xf]
        %v715 = vld [vmem:[#allocation8 + $0x30] sm:$0xf]
        %v716 = vld [vmem:[#allocation8 + $0x34] sm:$0xf]
        %v717 = vld [vmem:[#allocation8 + $0x38] sm:$0xf]
        %v718 = vld [vmem:[#allocation8 + $0x3c] sm:$0xf]
        %v719 = vld [vmem:[#allocation8 + $0x40] sm:$0xf]
        %v720 = vld [vmem:[#allocation8 + $0x44] sm:$0xf]
        %v721 = vld [vmem:[#allocation8 + $0x48] sm:$0xf]
        %v722 = vld [vmem:[#allocation8 + $0x4c] sm:$0xf]
        %v723 = vld [vmem:[#allocation8 + $0x50] sm:$0xf]
        %v724 = vld [vmem:[#allocation8 + $0x54] sm:$0xf]
        %v725 = vld [vmem:[#allocation8 + $0x58] sm:$0xf]
        %v726 = vld [vmem:[#allocation8 + $0x5c] sm:$0xf]
        %v727 = vld [vmem:[#allocation8 + $0x60] sm:$0xf]
        %v728 = vld [vmem:[#allocation8 + $0x64] sm:$0xf]
        %v729 = vld [vmem:[#allocation8 + $0x68] sm:$0xf]
        %v730 = vld [vmem:[#allocation8 + $0x6c] sm:$0xf]
        %v731 = vld [vmem:[#allocation8 + $0x70] sm:$0xf]
        %v732 = vld [vmem:[#allocation8 + $0x74] sm:$0xf]
        %v733 = vld [vmem:[#allocation8 + $0x78] sm:$0xf]
        %v734 = vld [vmem:[#allocation8 + $0x7c] sm:$0xf]
        %v737 = vunpack.c.l.b16 %v701
        %v738 = vunpack.c.h.b16 %v701
        %v739 = vunpack.c.l.b16 %v702
        %v740 = vunpack.c.h.b16 %v702
        %v741 = vpack.c.b16 %v739, %v737
        %v742 = vpack.c.b16 %v740, %v738
        %v777 = vunpack.c.l.b16 %v703
        %v778 = vunpack.c.l.b16 %v704
        %v779 = vunpack.c.l.b16 %v705
        %v780 = vunpack.c.l.b16 %v706
        %v781 = vunpack.c.l.b16 %v707
        %v782 = vunpack.c.l.b16 %v708
        %v783 = vunpack.c.l.b16 %v709
        %v784 = vunpack.c.l.b16 %v710
        %v785 = vunpack.c.l.b16 %v711
        %v786 = vunpack.c.l.b16 %v712
        %v787 = vunpack.c.l.b16 %v713
        %v788 = vunpack.c.l.b16 %v714
        %v789 = vunpack.c.l.b16 %v715
        %v790 = vunpack.c.l.b16 %v716
        %v791 = vunpack.c.l.b16 %v717
        %v792 = vunpack.c.l.b16 %v718
        %v793 = vunpack.c.l.b16 %v719
        %v794 = vunpack.c.l.b16 %v720
        %v795 = vunpack.c.l.b16 %v721
        %v796 = vunpack.c.l.b16 %v722
        %v797 = vunpack.c.l.b16 %v723
        %v798 = vunpack.c.l.b16 %v724
        %v799 = vunpack.c.l.b16 %v725
        %v800 = vunpack.c.l.b16 %v726
        %v801 = vunpack.c.l.b16 %v727
        %v802 = vunpack.c.l.b16 %v728
        %v803 = vunpack.c.l.b16 %v729
        %v804 = vunpack.c.l.b16 %v730
        %v805 = vunpack.c.l.b16 %v731
        %v806 = vunpack.c.l.b16 %v732
        %v807 = vunpack.c.l.b16 %v733
        %v808 = vunpack.c.l.b16 %v734
        %v809 = vpack.c.b16 %v778, %v777
        %v810 = vpack.c.b16 %v780, %v779
        %v811 = vpack.c.b16 %v782, %v781
        %v812 = vpack.c.b16 %v784, %v783
        %v813 = vpack.c.b16 %v786, %v785
        %v814 = vpack.c.b16 %v788, %v787
        %v815 = vpack.c.b16 %v790, %v789
        %v816 = vpack.c.b16 %v792, %v791
        %v817 = vpack.c.b16 %v794, %v793
        %v818 = vpack.c.b16 %v796, %v795
        %v819 = vpack.c.b16 %v798, %v797
        %v820 = vpack.c.b16 %v800, %v799
        %v821 = vpack.c.b16 %v802, %v801
        %v822 = vpack.c.b16 %v804, %v803
        %v823 = vpack.c.b16 %v806, %v805
        %v824 = vpack.c.b16 %v808, %v807
        %841 = vmatprep.subr.bf16.mxu0 0
        %842 = vmatpush1.bf16.msra.mxu0 %v809
        %843 = vmatprep.subr.bf16.mxu0 0
        %844 = vmatpush1.bf16.msra.mxu0 %v810
        %845 = vmatprep.subr.bf16.mxu0 0
        %846 = vmatpush1.bf16.msra.mxu0 %v811
        %847 = vmatprep.subr.bf16.mxu0 0
        %848 = vmatpush1.bf16.msra.mxu0 %v812
        %849 = vmatprep.subr.bf16.mxu0 0
        %850 = vmatpush1.bf16.msra.mxu0 %v813
        %851 = vmatprep.subr.bf16.mxu0 0
        %852 = vmatpush1.bf16.msra.mxu0 %v814
        %853 = vmatprep.subr.bf16.mxu0 0
        %854 = vmatpush1.bf16.msra.mxu0 %v815
        %855 = vmatprep.subr.bf16.mxu0 0
        %856 = vmatpush1.bf16.msra.mxu0 %v816
        %857 = vmatprep.subr.bf16.mxu0 0
        %858 = vmatpush1.bf16.msra.mxu0 %v817
        %859 = vmatprep.subr.bf16.mxu0 0
        %860 = vmatpush1.bf16.msra.mxu0 %v818
        %861 = vmatprep.subr.bf16.mxu0 0
        %862 = vmatpush1.bf16.msra.mxu0 %v819
        %863 = vmatprep.subr.bf16.mxu0 0
        %864 = vmatpush1.bf16.msra.mxu0 %v820
        %865 = vmatprep.subr.bf16.mxu0 0
        %866 = vmatpush1.bf16.msra.mxu0 %v821
        %867 = vmatprep.subr.bf16.mxu0 0
        %868 = vmatpush1.bf16.msra.mxu0 %v822
        %869 = vmatprep.subr.bf16.mxu0 0
        %870 = vmatpush1.bf16.msra.mxu0 %v823
        %871 = vmatprep.subr.bf16.mxu0 0
        %872 = vmatpush1.bf16.msra.mxu0 %v824
        %873 = vmatprep.mubr.bf16.mxu0 %v742
        %874 = vmatmul.mubr.bf16.gmra.mrb[0].mxu0 %v741
        %v875 = vpop.f32.mrb[0].mxu0
        %v876 = vadd.f32 0.0, %v875
        %v877 = vpop.f32.mrb[0].mxu0
        %v878 = vpop.f32.mrb[0].mxu0
        %v879 = vadd.f32 0.0, %v878
        %v880 = vpop.f32.mrb[0].mxu0
        %881 = vdwg.mxu0
        %882 = vst [vmem:[%s244] sm:$0xff] %v876
        %883 = vst [vmem:[%s244 + $0x8] sm:$0xff] %v879
        %v884 = vld [vmem:[#allocation2] sm:$0xff]
        %v885 = vld [vmem:[#allocation2 + $0x8] sm:$0xff]
        %v886 = vld [vmem:[#allocation2 + $0x10] sm:$0x11]
        %v887 = vld [vmem:[%s244] sm:$0xff]
        %v888 = vld [vmem:[%s244 + $0x8] sm:$0xff]
        %s889 = scalar_lea.vmem [#allocation8], 128
        %v890 = vld [vmem:[%s889] sm:$0xf]
        %v891 = vld [vmem:[%s889 + $0x4] sm:$0xf]
        %v892 = vld [vmem:[%s889 + $0x8] sm:$0xf]
        %v893 = vld [vmem:[%s889 + $0xc] sm:$0xf]
        %v894 = vld [vmem:[%s889 + $0x10] sm:$0xf]
        %v895 = vld [vmem:[%s889 + $0x14] sm:$0xf]
        %v896 = vld [vmem:[%s889 + $0x18] sm:$0xf]
        %v897 = vld [vmem:[%s889 + $0x1c] sm:$0xf]
        %v898 = vld [vmem:[%s889 + $0x20] sm:$0xf]
        %v899 = vld [vmem:[%s889 + $0x24] sm:$0xf]
        %v900 = vld [vmem:[%s889 + $0x28] sm:$0xf]
        %v901 = vld [vmem:[%s889 + $0x2c] sm:$0xf]
        %v902 = vld [vmem:[%s889 + $0x30] sm:$0xf]
        %v903 = vld [vmem:[%s889 + $0x34] sm:$0xf]
        %v904 = vld [vmem:[%s889 + $0x38] sm:$0xf]
        %v905 = vld [vmem:[%s889 + $0x3c] sm:$0xf]
        %v906 = vld [vmem:[%s889 + $0x40] sm:$0xf]
        %v907 = vld [vmem:[%s889 + $0x44] sm:$0xf]
        %v908 = vld [vmem:[%s889 + $0x48] sm:$0xf]
        %v909 = vld [vmem:[%s889 + $0x4c] sm:$0xf]
        %v910 = vld [vmem:[%s889 + $0x50] sm:$0xf]
        %v911 = vld [vmem:[%s889 + $0x54] sm:$0xf]
        %v912 = vld [vmem:[%s889 + $0x58] sm:$0xf]
        %v913 = vld [vmem:[%s889 + $0x5c] sm:$0xf]
        %v914 = vld [vmem:[%s889 + $0x60] sm:$0xf]
        %v915 = vld [vmem:[%s889 + $0x64] sm:$0xf]
        %v916 = vld [vmem:[%s889 + $0x68] sm:$0xf]
        %v917 = vld [vmem:[%s889 + $0x6c] sm:$0xf]
        %v918 = vld [vmem:[%s889 + $0x70] sm:$0xf]
        %v919 = vld [vmem:[%s889 + $0x74] sm:$0xf]
        %v920 = vld [vmem:[%s889 + $0x78] sm:$0xf]
        %v921 = vld [vmem:[%s889 + $0x7c] sm:$0xf]
        %v925 = vunpack.c.l.b16 %v884
        %v926 = vunpack.c.h.b16 %v884
        %v927 = vunpack.c.l.b16 %v885
        %v928 = vunpack.c.h.b16 %v885
        %v929 = vunpack.c.l.b16 %v886
        %v930 = vunpack.c.h.b16 %v886
        %v931 = vpack.c.b16 %v927, %v925
        %v932 = vpack.c.b16 %v928, %v926
        %v933 = vpack.c.b16 %v929, %v929
        %v934 = vpack.c.b16 %v930, %v930
        %v936 = vshrl.u32 %v931, 16
        %v938 = vshll.u32 %v931, 16
        %v940 = vrot.slane %v938, 1
        %v941 = vor.u32 %v936, %v940
        %v943 = vshll.u32 %v933, 16
        %v945 = vrot.slane %v943, 1
        %v946 = vsel %vm347, %v941, %v945
        %v948 = vshrl.u32 %v932, 16
        %v950 = vshll.u32 %v932, 16
        %v952 = vrot.slane %v950, 1
        %v953 = vor.u32 %v948, %v952
        %v955 = vshll.u32 %v934, 16
        %v957 = vrot.slane %v955, 1
        %v958 = vsel %vm347, %v953, %v957
        %v993 = vunpack.c.l.b16 %v890
        %v994 = vunpack.c.l.b16 %v891
        %v995 = vunpack.c.l.b16 %v892
        %v996 = vunpack.c.l.b16 %v893
        %v997 = vunpack.c.l.b16 %v894
        %v998 = vunpack.c.l.b16 %v895
        %v999 = vunpack.c.l.b16 %v896
        %v1000 = vunpack.c.l.b16 %v897
        %v1001 = vunpack.c.l.b16 %v898
        %v1002 = vunpack.c.l.b16 %v899
        %v1003 = vunpack.c.l.b16 %v900
        %v1004 = vunpack.c.l.b16 %v901
        %v1005 = vunpack.c.l.b16 %v902
        %v1006 = vunpack.c.l.b16 %v903
        %v1007 = vunpack.c.l.b16 %v904
        %v1008 = vunpack.c.l.b16 %v905
        %v1009 = vunpack.c.l.b16 %v906
        %v1010 = vunpack.c.l.b16 %v907
        %v1011 = vunpack.c.l.b16 %v908
        %v1012 = vunpack.c.l.b16 %v909
        %v1013 = vunpack.c.l.b16 %v910
        %v1014 = vunpack.c.l.b16 %v911
        %v1015 = vunpack.c.l.b16 %v912
        %v1016 = vunpack.c.l.b16 %v913
        %v1017 = vunpack.c.l.b16 %v914
        %v1018 = vunpack.c.l.b16 %v915
        %v1019 = vunpack.c.l.b16 %v916
        %v1020 = vunpack.c.l.b16 %v917
        %v1021 = vunpack.c.l.b16 %v918
        %v1022 = vunpack.c.l.b16 %v919
        %v1023 = vunpack.c.l.b16 %v920
        %v1024 = vunpack.c.l.b16 %v921
        %v1025 = vpack.c.b16 %v994, %v993
        %v1026 = vpack.c.b16 %v996, %v995
        %v1027 = vpack.c.b16 %v998, %v997
        %v1028 = vpack.c.b16 %v1000, %v999
        %v1029 = vpack.c.b16 %v1002, %v1001
        %v1030 = vpack.c.b16 %v1004, %v1003
        %v1031 = vpack.c.b16 %v1006, %v1005
        %v1032 = vpack.c.b16 %v1008, %v1007
        %v1033 = vpack.c.b16 %v1010, %v1009
        %v1034 = vpack.c.b16 %v1012, %v1011
        %v1035 = vpack.c.b16 %v1014, %v1013
        %v1036 = vpack.c.b16 %v1016, %v1015
        %v1037 = vpack.c.b16 %v1018, %v1017
        %v1038 = vpack.c.b16 %v1020, %v1019
        %v1039 = vpack.c.b16 %v1022, %v1021
        %v1040 = vpack.c.b16 %v1024, %v1023
        %1057 = vmatprep.subr.bf16.mxu0 0
        %1058 = vmatpush1.bf16.msra.mxu0 %v1025
        %1059 = vmatprep.subr.bf16.mxu0 0
        %1060 = vmatpush1.bf16.msra.mxu0 %v1026
        %1061 = vmatprep.subr.bf16.mxu0 0
        %1062 = vmatpush1.bf16.msra.mxu0 %v1027
        %1063 = vmatprep.subr.bf16.mxu0 0
        %1064 = vmatpush1.bf16.msra.mxu0 %v1028
        %1065 = vmatprep.subr.bf16.mxu0 0
        %1066 = vmatpush1.bf16.msra.mxu0 %v1029
        %1067 = vmatprep.subr.bf16.mxu0 0
        %1068 = vmatpush1.bf16.msra.mxu0 %v1030
        %1069 = vmatprep.subr.bf16.mxu0 0
        %1070 = vmatpush1.bf16.msra.mxu0 %v1031
        %1071 = vmatprep.subr.bf16.mxu0 0
        %1072 = vmatpush1.bf16.msra.mxu0 %v1032
        %1073 = vmatprep.subr.bf16.mxu0 0
        %1074 = vmatpush1.bf16.msra.mxu0 %v1033
        %1075 = vmatprep.subr.bf16.mxu0 0
        %1076 = vmatpush1.bf16.msra.mxu0 %v1034
        %1077 = vmatprep.subr.bf16.mxu0 0
        %1078 = vmatpush1.bf16.msra.mxu0 %v1035
        %1079 = vmatprep.subr.bf16.mxu0 0
        %1080 = vmatpush1.bf16.msra.mxu0 %v1036
        %1081 = vmatprep.subr.bf16.mxu0 0
        %1082 = vmatpush1.bf16.msra.mxu0 %v1037
        %1083 = vmatprep.subr.bf16.mxu0 0
        %1084 = vmatpush1.bf16.msra.mxu0 %v1038
        %1085 = vmatprep.subr.bf16.mxu0 0
        %1086 = vmatpush1.bf16.msra.mxu0 %v1039
        %1087 = vmatprep.subr.bf16.mxu0 0
        %1088 = vmatpush1.bf16.msra.mxu0 %v1040
        %1089 = vmatprep.mubr.bf16.mxu0 %v958
        %1090 = vmatmul.mubr.bf16.gmra.mrb[0].mxu0 %v946
        %v1091 = vpop.f32.mrb[0].mxu0
        %v1092 = vadd.f32 0.0, %v1091
        %v1093 = vpop.f32.mrb[0].mxu0
        %v1094 = vpop.f32.mrb[0].mxu0
        %v1095 = vadd.f32 0.0, %v1094
        %v1096 = vpop.f32.mrb[0].mxu0
        %1097 = vdwg.mxu0
        %v1098 = vadd.f32 %v887, %v1092
        %v1099 = vadd.f32 %v888, %v1095
        %1100 = vst [vmem:[%s244] sm:$0xff] %v1098
        %1101 = vst [vmem:[%s244 + $0x8] sm:$0xff] %v1099
        %v1102 = vld [vmem:[#allocation2] sm:$0xee]
        %v1103 = vld [vmem:[#allocation2 + $0x8] sm:$0xff]
        %v1104 = vld [vmem:[#allocation2 + $0x10] sm:$0x11]
        %v1105 = vld [vmem:[%s244] sm:$0xff]
        %v1106 = vld [vmem:[%s244 + $0x8] sm:$0xff]
        %s1107 = scalar_lea.vmem [#allocation8], 256
        %v1108 = vld [vmem:[%s1107] sm:$0xf]
        %v1109 = vld [vmem:[%s1107 + $0x4] sm:$0xf]
        %v1110 = vld [vmem:[%s1107 + $0x8] sm:$0xf]
        %v1111 = vld [vmem:[%s1107 + $0xc] sm:$0xf]
        %v1112 = vld [vmem:[%s1107 + $0x10] sm:$0xf]
        %v1113 = vld [vmem:[%s1107 + $0x14] sm:$0xf]
        %v1114 = vld [vmem:[%s1107 + $0x18] sm:$0xf]
        %v1115 = vld [vmem:[%s1107 + $0x1c] sm:$0xf]
        %v1116 = vld [vmem:[%s1107 + $0x20] sm:$0xf]
        %v1117 = vld [vmem:[%s1107 + $0x24] sm:$0xf]
        %v1118 = vld [vmem:[%s1107 + $0x28] sm:$0xf]
        %v1119 = vld [vmem:[%s1107 + $0x2c] sm:$0xf]
        %v1120 = vld [vmem:[%s1107 + $0x30] sm:$0xf]
        %v1121 = vld [vmem:[%s1107 + $0x34] sm:$0xf]
        %v1122 = vld [vmem:[%s1107 + $0x38] sm:$0xf]
        %v1123 = vld [vmem:[%s1107 + $0x3c] sm:$0xf]
        %v1124 = vld [vmem:[%s1107 + $0x40] sm:$0xf]
        %v1125 = vld [vmem:[%s1107 + $0x44] sm:$0xf]
        %v1126 = vld [vmem:[%s1107 + $0x48] sm:$0xf]
        %v1127 = vld [vmem:[%s1107 + $0x4c] sm:$0xf]
        %v1128 = vld [vmem:[%s1107 + $0x50] sm:$0xf]
        %v1129 = vld [vmem:[%s1107 + $0x54] sm:$0xf]
        %v1130 = vld [vmem:[%s1107 + $0x58] sm:$0xf]
        %v1131 = vld [vmem:[%s1107 + $0x5c] sm:$0xf]
        %v1132 = vld [vmem:[%s1107 + $0x60] sm:$0xf]
        %v1133 = vld [vmem:[%s1107 + $0x64] sm:$0xf]
        %v1134 = vld [vmem:[%s1107 + $0x68] sm:$0xf]
        %v1135 = vld [vmem:[%s1107 + $0x6c] sm:$0xf]
        %v1136 = vld [vmem:[%s1107 + $0x70] sm:$0xf]
        %v1137 = vld [vmem:[%s1107 + $0x74] sm:$0xf]
        %v1138 = vld [vmem:[%s1107 + $0x78] sm:$0xf]
        %v1139 = vld [vmem:[%s1107 + $0x7c] sm:$0xf]
        %v1143 = vunpack.c.l.b16 %v1102
        %v1144 = vunpack.c.h.b16 %v1102
        %v1145 = vunpack.c.l.b16 %v1103
        %v1146 = vunpack.c.h.b16 %v1103
        %v1147 = vunpack.c.l.b16 %v1104
        %v1148 = vunpack.c.h.b16 %v1104
        %v1149 = vpack.c.b16 %v1145, %v1143
        %v1150 = vpack.c.b16 %v1146, %v1144
        %v1151 = vpack.c.b16 %v1147, %v1147
        %v1152 = vpack.c.b16 %v1148, %v1148
        %v1153 = vrot.slane %v1149, 1
        %v1154 = vrot.slane %v1151, 1
        %v1155 = vsel %vm561, %v1153, %v1154
        %v1156 = vrot.slane %v1150, 1
        %v1157 = vrot.slane %v1152, 1
        %v1158 = vsel %vm561, %v1156, %v1157
        %v1193 = vunpack.c.l.b16 %v1108
        %v1194 = vunpack.c.l.b16 %v1109
        %v1195 = vunpack.c.l.b16 %v1110
        %v1196 = vunpack.c.l.b16 %v1111
        %v1197 = vunpack.c.l.b16 %v1112
        %v1198 = vunpack.c.l.b16 %v1113
        %v1199 = vunpack.c.l.b16 %v1114
        %v1200 = vunpack.c.l.b16 %v1115
        %v1201 = vunpack.c.l.b16 %v1116
        %v1202 = vunpack.c.l.b16 %v1117
        %v1203 = vunpack.c.l.b16 %v1118
        %v1204 = vunpack.c.l.b16 %v1119
        %v1205 = vunpack.c.l.b16 %v1120
        %v1206 = vunpack.c.l.b16 %v1121
        %v1207 = vunpack.c.l.b16 %v1122
        %v1208 = vunpack.c.l.b16 %v1123
        %v1209 = vunpack.c.l.b16 %v1124
        %v1210 = vunpack.c.l.b16 %v1125
        %v1211 = vunpack.c.l.b16 %v1126
        %v1212 = vunpack.c.l.b16 %v1127
        %v1213 = vunpack.c.l.b16 %v1128
        %v1214 = vunpack.c.l.b16 %v1129
        %v1215 = vunpack.c.l.b16 %v1130
        %v1216 = vunpack.c.l.b16 %v1131
        %v1217 = vunpack.c.l.b16 %v1132
        %v1218 = vunpack.c.l.b16 %v1133
        %v1219 = vunpack.c.l.b16 %v1134
        %v1220 = vunpack.c.l.b16 %v1135
        %v1221 = vunpack.c.l.b16 %v1136
        %v1222 = vunpack.c.l.b16 %v1137
        %v1223 = vunpack.c.l.b16 %v1138
        %v1224 = vunpack.c.l.b16 %v1139
        %v1225 = vpack.c.b16 %v1194, %v1193
        %v1226 = vpack.c.b16 %v1196, %v1195
        %v1227 = vpack.c.b16 %v1198, %v1197
        %v1228 = vpack.c.b16 %v1200, %v1199
        %v1229 = vpack.c.b16 %v1202, %v1201
        %v1230 = vpack.c.b16 %v1204, %v1203
        %v1231 = vpack.c.b16 %v1206, %v1205
        %v1232 = vpack.c.b16 %v1208, %v1207
        %v1233 = vpack.c.b16 %v1210, %v1209
        %v1234 = vpack.c.b16 %v1212, %v1211
        %v1235 = vpack.c.b16 %v1214, %v1213
        %v1236 = vpack.c.b16 %v1216, %v1215
        %v1237 = vpack.c.b16 %v1218, %v1217
        %v1238 = vpack.c.b16 %v1220, %v1219
        %v1239 = vpack.c.b16 %v1222, %v1221
        %v1240 = vpack.c.b16 %v1224, %v1223
        %1257 = vmatprep.subr.bf16.mxu0 0
        %1258 = vmatpush1.bf16.msra.mxu0 %v1225
        %1259 = vmatprep.subr.bf16.mxu0 0
        %1260 = vmatpush1.bf16.msra.mxu0 %v1226
        %1261 = vmatprep.subr.bf16.mxu0 0
        %1262 = vmatpush1.bf16.msra.mxu0 %v1227
        %1263 = vmatprep.subr.bf16.mxu0 0
        %1264 = vmatpush1.bf16.msra.mxu0 %v1228
        %1265 = vmatprep.subr.bf16.mxu0 0
        %1266 = vmatpush1.bf16.msra.mxu0 %v1229
        %1267 = vmatprep.subr.bf16.mxu0 0
        %1268 = vmatpush1.bf16.msra.mxu0 %v1230
        %1269 = vmatprep.subr.bf16.mxu0 0
        %1270 = vmatpush1.bf16.msra.mxu0 %v1231
        %1271 = vmatprep.subr.bf16.mxu0 0
        %1272 = vmatpush1.bf16.msra.mxu0 %v1232
        %1273 = vmatprep.subr.bf16.mxu0 0
        %1274 = vmatpush1.bf16.msra.mxu0 %v1233
        %1275 = vmatprep.subr.bf16.mxu0 0
        %1276 = vmatpush1.bf16.msra.mxu0 %v1234
        %1277 = vmatprep.subr.bf16.mxu0 0
        %1278 = vmatpush1.bf16.msra.mxu0 %v1235
        %1279 = vmatprep.subr.bf16.mxu0 0
        %1280 = vmatpush1.bf16.msra.mxu0 %v1236
        %1281 = vmatprep.subr.bf16.mxu0 0
        %1282 = vmatpush1.bf16.msra.mxu0 %v1237
        %1283 = vmatprep.subr.bf16.mxu0 0
        %1284 = vmatpush1.bf16.msra.mxu0 %v1238
        %1285 = vmatprep.subr.bf16.mxu0 0
        %1286 = vmatpush1.bf16.msra.mxu0 %v1239
        %1287 = vmatprep.subr.bf16.mxu0 0
        %1288 = vmatpush1.bf16.msra.mxu0 %v1240
        %1289 = vmatprep.mubr.bf16.mxu0 %v1158
        %1290 = vmatmul.mubr.bf16.gmra.mrb[0].mxu0 %v1155
        %v1291 = vpop.f32.mrb[0].mxu0
        %v1292 = vadd.f32 0.0, %v1291
        %v1293 = vpop.f32.mrb[0].mxu0
        %v1294 = vpop.f32.mrb[0].mxu0
        %v1295 = vadd.f32 0.0, %v1294
        %v1296 = vpop.f32.mrb[0].mxu0
        %1297 = vdwg.mxu0
        %v1298 = vadd.f32 %v1105, %v1292
        %v1299 = vadd.f32 %v1106, %v1295
        %1300 = vst [vmem:[%s244] sm:$0xff] %v1298
        %1301 = vst [vmem:[%s244 + $0x8] sm:$0xff] %v1299
        %s1302 = sand.u32 %s119, 1
        %s1303 = scalar_lea.sflag [#allocation5], %s1302
        %s1304 = sand.u32 %s119, 1
        %s1305 = smul.addr %s1304, 16
        %s1306 = scalar_lea.vmem [#allocation9], %s1305
        // Predicated region
        $region49: #{tpu_custom_call.1} parent=35 // pred_check
          %p1307 = pneg %p129
        $region50: #{tpu_custom_call.1} parent=35 // pred_check_branch
          %1309 = sbr.rel (%p1307) target = $region52
        $region51: #{tpu_custom_call.1} parent=35 // pred_region
          %s1311 = ssub.s32 256, 256
          %1312 = vsyncadd %s1303, %s1311
          %s1313 = smul.addr %s22, 2
          %s1314 = smul.addr %s1313, 128
          %s1315 = scalar_lea.hbm %s4, %s1314
          %s1316 = sshll.u32 %s1306, 4
          %s1317 = int_to_ptr.vmem [resolvable:$true] %s1316
          %1322 = dma.vmem_to_hbm [thread:$0]  %s1317, 256, %s1315, %s1303, 128, 128, 8
        $region52: #{tpu_custom_call.1} parent=35 // pred_fallthru
          _
      $region36: #{tpu_custom_call.1} parent=5 // pred_fallthru
        _
      %p1323 = scmp.le.s32.totalorder 2, %s17
      // Predicated region
      $region53: #{tpu_custom_call.1} parent=5 // pred_check
        %p1324 = pneg %p1323
      $region54: #{tpu_custom_call.1} parent=5 // pred_check_branch
        %1326 = sbr.rel (%p1324) target = $region56
      $region55: #{tpu_custom_call.1} parent=5 // pred_region
        %s1327 = ssub.s32 %s17, 2
        // Predicated region
        $region57: #{tpu_custom_call.1} parent=55 // pred_check
          %p1328 = pneg %p135
        $region58: #{tpu_custom_call.1} parent=55 // pred_check_branch
          %1330 = sbr.rel (%p1328) target = $region60
        $region59: #{tpu_custom_call.1} parent=55 // pred_region
          %s1331 = sand.u32 %s120, 1
          %s1332 = scalar_lea.sflag [#allocation5], %s1331
          %s1333 = sand.u32 %s120, 1
          %s1334 = smul.addr %s1333, 16
          %s1335 = scalar_lea.vmem [#allocation9], %s1334
          %1336 = dma.done %s1332, 256
        $region60: #{tpu_custom_call.1} parent=55 // pred_fallthru
          _
      $region56: #{tpu_custom_call.1} parent=5 // pred_fallthru
        _
    $region6: #{tpu_custom_call.1} parent=1 // loop_footer
      %s21 = sadd.s32 1, %s17
    $region7: #{tpu_custom_call.1} parent=1 // loop_footer_branch
      %16 = sbr.rel target = $region3
    $region8: #{tpu_custom_call.1} parent=1 // loop_exit
      _
    %1337 = vsyncpa [#allocation4], 1
    %s1338 = scalar_lea.sflag [#allocation4], 1
    %1339 = vsyncpa %s1338, 1
    %1340 = vsyncpa [#allocation7], 1
    %1341 = vsyncpa [#allocation5], 1
    %s1342 = scalar_lea.sflag [#allocation5], 1
    %1343 = vsyncpa %s1342, 1

</llo_original>
